<compile_context>
chip_gen: v6e
topology: v6e:2x2x1
jax: 0.10.0
libtpu: 0.0.40
codegen_flags: <defaults>
</compile_context>

<pallas_src>
import functools

import jax
import jax.numpy as jnp
from jax import lax
from jax.experimental import pallas as pl
from jax.experimental.pallas import tpu as pltpu

_LK_TILE_TARGET = 512     # K/V rows streamed per inner (flash) step


def _vmem_budget_and_limit():
    """Generation-aware per-step working-set budget and scoped-VMEM limit (bytes)."""
    try:
        cap = int(pltpu.get_tpu_info().vmem_capacity_bytes)
    except Exception:
        cap = 64 * 1024 * 1024                       # conservative (v7x-sized) fallback
    if cap >= 96 * 1024 * 1024:                      # v5e / v6e: 128 MiB physical VMEM
        return 40 * 1024 * 1024, 80 * 1024 * 1024
    return 16 * 1024 * 1024, 44 * 1024 * 1024        # v7x: 64 MiB physical VMEM


def _lk_tile_candidates(Lk, target=_LK_TILE_TARGET):
    """Valid K/V tile sizes, largest first: full Lk, or sublane-aligned divisors of Lk."""
    cands = [d for d in range(8, min(Lk, target) + 1, 8) if Lk % d == 0]
    if Lk <= target or not cands:
        # TODO(synk): for huge Lk with no sublane-aligned divisor (e.g. prime Lk) this
        # falls back to a single full-Lk tile; a masked remainder tile would bound VMEM.
        cands.append(Lk)
    return sorted(set(cands), reverse=True)


def _per_batch_vmem_bytes(Lq, lk_t, Dq, Dk, Dv, itemsize, shared_kv):
    """VMEM bytes per batch row per grid step: double-buffered I/O blocks + persistent
    scratch + live f32 intermediates (scores+exp, pv, qw temp) + downcast p copy."""
    n_v = 0 if shared_kv else 1
    io = 2 * (Lq * Dq + lk_t * Dk + n_v * lk_t * Dv + Lq * Dv) * itemsize
    scratch = Lq * Dk * itemsize + (2 * Lq + Lq * Dv) * 4
    interm = (2 * Lq * lk_t + Lq * Dv + Lq * Dk) * 4 + Lq * lk_t * itemsize
    return io + scratch + interm


def _pick_bt(B, per_b, budget):
    """Largest batch tile that fits the budget, divides B, and keeps enough batch grid
    steps for DMA pipelining (>=4 steps when B allows: >=2 per v7x TensorCore)."""
    bt = max(1, min(B, budget // max(per_b, 1)))
    if B >= 4:
        bt = min(bt, max(1, B // 4))
    elif B >= 2:
        bt = min(bt, (B + 1) // 2)
    while B % bt:
        bt -= 1
    return bt


def _attention_general_kernel(shared_kv, approx_recip, q_ref, k_ref, *args):
    """One (batch-tile, Lk-tile) grid step of method='general' attention with an
    online-softmax (flash) reduction over the inner Lk grid axis."""
    if shared_kv:
        w_ref, o_ref, qw_sc, m_sc, l_sc, acc_sc = args
        v_ref = k_ref                     # values default to keys: single shared DMA block
    else:
        v_ref, w_ref, o_ref, qw_sc, m_sc, l_sc, acc_sc = args

    kv = pl.program_id(1)

    @pl.when(kv == 0)
    def _init():
        bt, lq, dq = q_ref.shape
        # Q @ W^T once per batch tile; flatten (bt, Lq) -> M so the MXU sees bt*Lq rows.
        q2 = q_ref[...].reshape(bt * lq, dq)
        qw = jnp.dot(q2, w_ref[...], preferred_element_type=jnp.float32)
        qw_sc[...] = qw.reshape(bt, lq, -1).astype(qw_sc.dtype)
        m_sc[...] = jnp.full_like(m_sc, -jnp.inf)
        l_sc[...] = jnp.zeros_like(l_sc)
        acc_sc[...] = jnp.zeros_like(acc_sc)

    # scores tile = (Q W^T) @ K^T without materializing a transpose:
    # contract last axes, batch over the batch-tile axis.
    s = lax.dot_general(qw_sc[...], k_ref[...],
                        dimension_numbers=(((2,), (2,)), ((0,), (0,))),
                        preferred_element_type=jnp.float32)          # (bt, Lq, lk_t) f32

    m_prev = m_sc[...]
    m_new = jnp.maximum(m_prev, jnp.max(s, axis=-1, keepdims=True))
    corr = jnp.exp(m_prev - m_new)
    p = jnp.exp(s - m_new)                                           # un-normalized probs
    l_sc[...] = corr * l_sc[...] + jnp.sum(p, axis=-1, keepdims=True)
    # Deferred normalization: accumulate un-normalized P @ V, divide once at finalize.
    pv = lax.dot_general(p.astype(v_ref.dtype), v_ref[...],
                         dimension_numbers=(((2,), (1,)), ((0,), (0,))),
                         preferred_element_type=jnp.float32)         # (bt, Lq, Dv) f32
    acc_sc[...] = corr * acc_sc[...] + pv
    m_sc[...] = m_new

    @pl.when(kv == pl.num_programs(1) - 1)
    def _finalize():
        l = l_sc[...]
        inv = pl.reciprocal(l, approx=approx_recip)
        # PyTorch's alphas.masked_fill(alphas != alphas, 0): with mask=None, NaN only
        # arises from a zero softmax denominator -> zero those rows instead of a
        # full-size (Lq, Lk) select.
        inv = jnp.where(l > 0.0, inv, jnp.zeros_like(inv))
        o_ref[...] = (acc_sc[...] * inv).astype(o_ref.dtype)


@jax.jit
def attention_general(queries, keys, w_t, values=None):
    """
    queries: (B, Lq, Dq)   keys: (B, Lk, Dk)   w_t: (Dq, Dk) = W.weight^T
    values: optional (B, Lk, Dv); defaults to keys (module default).
    returns: (B, Lq, Dv)
    """
    B, Lq, Dq = queries.shape
    _, Lk, Dk = keys.shape
    shared_kv = values is None
    Dv = Dk if shared_kv else values.shape[-1]
    itemsize = queries.dtype.itemsize

    budget, vmem_limit = _vmem_budget_and_limit()

    # Pick the Lk (flash) tile first; shrink it before shrinking the batch tile.
    lk_t = Lk
    per_b = _per_batch_vmem_bytes(Lq, Lk, Dq, Dk, Dv, itemsize, shared_kv)
    for cand in _lk_tile_candidates(Lk):
        per_b = _per_batch_vmem_bytes(Lq, cand, Dq, Dk, Dv, itemsize, shared_kv)
        lk_t = cand
        if per_b <= budget:
            break
    # TODO(synk): if a single batch row still exceeds the budget (huge Lq), an Lq-tiled
    # grid axis would be the next bounding step.
    bt = _pick_bt(B, per_b, budget)
    grid = (B // bt, Lk // lk_t)

    # Full-extent last-dim blocks (no wrapper-side HBM padding round trips).
    # TODO(synk): when Dv is far below 128, a lane-dense padded output slab would trade
    # masked vst's for one extra slice copy; not worth it for a memory-bound kernel.
    in_specs = [pl.BlockSpec((bt, Lq, Dq), lambda b, k: (b, 0, 0)),
                pl.BlockSpec((bt, lk_t, Dk), lambda b, k: (b, k, 0))]
    operands = [queries, keys]
    if not shared_kv:
        in_specs.append(pl.BlockSpec((bt, lk_t, Dv), lambda b, k: (b, k, 0)))
        operands.append(values)
    in_specs.append(pl.BlockSpec((Dq, Dk), lambda b, k: (0, 0)))
    operands.append(w_t)

    approx_recip = queries.dtype == jnp.bfloat16

    # TODO(synk): mask / top_k / dropout branches of forward are inactive with default
    # args (mask=None, top_k=None, dropout_rate=0.0) and are not ported.
    out = pl.pallas_call(
        functools.partial(_attention_general_kernel, shared_kv, approx_recip),
        out_shape=jax.ShapeDtypeStruct((B, Lq, Dv), queries.dtype),
        grid_spec=pltpu.PrefetchScalarGridSpec(
            num_scalar_prefetch=0,
            grid=grid,
            in_specs=in_specs,
            out_specs=pl.BlockSpec((bt, Lq, Dv), lambda b, k: (b, 0, 0)),
            scratch_shapes=[
                pltpu.VMEM((bt, Lq, Dk), queries.dtype),   # qw = Q @ W^T (per batch tile)
                pltpu.VMEM((bt, Lq, 1), jnp.float32),      # running max m
                pltpu.VMEM((bt, Lq, 1), jnp.float32),      # running denom l
                pltpu.VMEM((bt, Lq, Dv), jnp.float32),     # un-normalized P @ V accum
            ]),
        compiler_params=pltpu.CompilerParams(
            dimension_semantics=("parallel", "arbitrary"),
            vmem_limit_bytes=vmem_limit),
    )(*operands)
    return out


def _reference(queries, keys, values, w_t):
    scores = jnp.einsum("bqd,de,bke->bqk", queries, w_t, keys)
    alphas = jax.nn.softmax(scores, axis=-1)
    alphas = jnp.where(jnp.isnan(alphas), 0.0, alphas)
    return jnp.einsum("bqk,bkd->bqd", alphas, values)


if __name__ == "__main__":
    key = jax.random.PRNGKey(0)
    kq, kk, kw, kq2, kk2, kv2, kw2 = jax.random.split(key, 7)

    # Case 1: module defaults (values = keys), small shapes.
    B, Lq, Lk = 2, 8, 8
    query_dim, key_dim = 32, 32
    queries = jax.random.normal(kq, (B, Lq, query_dim), dtype=jnp.float32)
    keys = jax.random.normal(kk, (B, Lk, key_dim), dtype=jnp.float32)
    # nn.Linear(query_dim, key_dim, bias=False): W.weight is (key_dim, query_dim);
    # we store its transpose (Dq, Dk).
    bound = 1.0 / (query_dim ** 0.5)
    w_weight = jax.random.uniform(kw, (key_dim, query_dim),
                                  minval=-bound, maxval=bound, dtype=jnp.float32)
    w_t = w_weight.T

    out = jax.block_until_ready(attention_general(queries, keys, w_t))
    ref = _reference(queries, keys, keys, w_t)
    assert out.shape == (B, Lq, key_dim)
    assert jnp.allclose(out, ref, atol=1e-5, rtol=1e-5), "mismatch vs reference (shared KV)"

    # Case 2: explicit values with a different value_dim, larger batch.
    B2, Lq2, Lk2, qd2, kd2, vd2 = 4, 8, 16, 32, 32, 16
    q2 = jax.random.normal(kq2, (B2, Lq2, qd2), dtype=jnp.float32)
    k2 = jax.random.normal(kk2, (B2, Lk2, kd2), dtype=jnp.float32)
    v2 = jax.random.normal(kv2, (B2, Lk2, vd2), dtype=jnp.float32)
    w2 = jax.random.uniform(kw2, (kd2, qd2), minval=-bound, maxval=bound,
                            dtype=jnp.float32).T
    out2 = jax.block_until_ready(attention_general(q2, k2, w2, v2))
    ref2 = _reference(q2, k2, v2, w2)
    assert out2.shape == (B2, Lq2, vd2)
    assert jnp.allclose(out2, ref2, atol=1e-5, rtol=1e-5), "mismatch vs reference (explicit V)"

    print("KERNEL_OK")
</pallas_src>

<mosaic_0001>
module attributes {stable_mosaic.version = 11 : i64} {
  func.func @_attention_general_kernel(%arg0: i32, %arg1: i32, %arg2: memref<1x8x32xf32, #tpu.memory_space<vmem>>, %arg3: memref<1x8x32xf32, #tpu.memory_space<vmem>>, %arg4: memref<32x32xf32, #tpu.memory_space<vmem>>, %arg5: memref<1x8x32xf32, #tpu.memory_space<vmem>>, %arg6: memref<1x8x32xf32, #tpu.memory_space<vmem>>, %arg7: memref<1x8x1xf32, #tpu.memory_space<vmem>>, %arg8: memref<1x8x1xf32, #tpu.memory_space<vmem>>, %arg9: memref<1x8x32xf32, #tpu.memory_space<vmem>>) attributes {dimension_semantics = [#tpu.dimension_semantics<parallel>, #tpu.dimension_semantics<arbitrary>], iteration_bounds = array<i64: 2, 1>, scalar_prefetch = 0 : i64, scratch_operands = 4 : i64, tpu.core_type = #tpu.core_type<tc>, window_params = [{transform_indices = @transform_0, window_bounds = array<i64: 1, 8, 32>}, {transform_indices = @transform_1, window_bounds = array<i64: 1, 8, 32>}, {pipeline_mode = #tpu.pipeline_mode<synchronous>, transform_indices = @transform_2, window_bounds = array<i64: 32, 32>}, {transform_indices = @transform_3, window_bounds = array<i64: 1, 8, 32>}]} {
    %c0_i32 = arith.constant 0 : i32
    %0 = arith.cmpi eq, %arg1, %c0_i32 : i32
    %1 = arith.extui %0 : i1 to i32
    %c0_i32_0 = arith.constant 0 : i32
    %2 = arith.cmpi ne, %1, %c0_i32_0 : i32
    scf.if %2 {
      %c0_32 = arith.constant 0 : index
      %c0_33 = arith.constant 0 : index
      %c0_34 = arith.constant 0 : index
      %32 = vector.load %arg2[%c0_32, %c0_33, %c0_34] : memref<1x8x32xf32, #tpu.memory_space<vmem>>, vector<1x8x32xf32>
      %33 = vector.shape_cast %32 : vector<1x8x32xf32> to vector<8x32xf32>
      %c0_35 = arith.constant 0 : index
      %c0_36 = arith.constant 0 : index
      %34 = vector.load %arg4[%c0_35, %c0_36] : memref<32x32xf32, #tpu.memory_space<vmem>>, vector<32x32xf32>
      %cst_37 = arith.constant dense<0.000000e+00> : vector<8x32xf32>
      %35 = tpu.matmul %33, %34, %cst_37 {dimension_numbers = #tpu.dot_dimension_numbers<[1], [0], [0], [1], [0, 0, 1, 1], [], []>} : vector<8x32xf32>, vector<32x32xf32>, vector<8x32xf32> -> vector<8x32xf32>
      %36 = vector.shape_cast %35 : vector<8x32xf32> to vector<1x8x32xf32>
      %c0_38 = arith.constant 0 : index
      %c0_39 = arith.constant 0 : index
      %c0_40 = arith.constant 0 : index
      %37 = vector.load %arg6[%c0_38, %c0_39, %c0_40] : memref<1x8x32xf32, #tpu.memory_space<vmem>>, vector<1x8x32xf32>
      tpu.vector_store %arg6[%c0_38, %c0_39, %c0_40], %36 {strides = array<i32>} : memref<1x8x32xf32, #tpu.memory_space<vmem>>, vector<1x8x32xf32>,
      %cst_41 = arith.constant 0xFF800000 : f32
      %38 = vector.broadcast %cst_41 : f32 to vector<1x8x1xf32>
      %c0_42 = arith.constant 0 : index
      %c0_43 = arith.constant 0 : index
      %c0_44 = arith.constant 0 : index
      %39 = vector.load %arg7[%c0_42, %c0_43, %c0_44] : memref<1x8x1xf32, #tpu.memory_space<vmem>>, vector<1x8x1xf32>
      tpu.vector_store %arg7[%c0_42, %c0_43, %c0_44], %38 {strides = array<i32>} : memref<1x8x1xf32, #tpu.memory_space<vmem>>, vector<1x8x1xf32>,
      %cst_45 = arith.constant 0.000000e+00 : f32
      %40 = vector.broadcast %cst_45 : f32 to vector<1x8x1xf32>
      %c0_46 = arith.constant 0 : index
      %c0_47 = arith.constant 0 : index
      %c0_48 = arith.constant 0 : index
      %41 = vector.load %arg8[%c0_46, %c0_47, %c0_48] : memref<1x8x1xf32, #tpu.memory_space<vmem>>, vector<1x8x1xf32>
      tpu.vector_store %arg8[%c0_46, %c0_47, %c0_48], %40 {strides = array<i32>} : memref<1x8x1xf32, #tpu.memory_space<vmem>>, vector<1x8x1xf32>,
      %cst_49 = arith.constant 0.000000e+00 : f32
      %42 = vector.broadcast %cst_49 : f32 to vector<1x8x32xf32>
      %c0_50 = arith.constant 0 : index
      %c0_51 = arith.constant 0 : index
      %c0_52 = arith.constant 0 : index
      %43 = vector.load %arg9[%c0_50, %c0_51, %c0_52] : memref<1x8x32xf32, #tpu.memory_space<vmem>>, vector<1x8x32xf32>
      tpu.vector_store %arg9[%c0_50, %c0_51, %c0_52], %42 {strides = array<i32>} : memref<1x8x32xf32, #tpu.memory_space<vmem>>, vector<1x8x32xf32>,
    } else {
    }
    %c0 = arith.constant 0 : index
    %c0_1 = arith.constant 0 : index
    %c0_2 = arith.constant 0 : index
    %3 = vector.load %arg6[%c0, %c0_1, %c0_2] : memref<1x8x32xf32, #tpu.memory_space<vmem>>, vector<1x8x32xf32>
    %c0_3 = arith.constant 0 : index
    %c0_4 = arith.constant 0 : index
    %c0_5 = arith.constant 0 : index
    %4 = vector.load %arg3[%c0_3, %c0_4, %c0_5] : memref<1x8x32xf32, #tpu.memory_space<vmem>>, vector<1x8x32xf32>
    %cst = arith.constant dense<0.000000e+00> : vector<1x8x8xf32>
    %5 = tpu.matmul %3, %4, %cst {dimension_numbers = #tpu.dot_dimension_numbers<[2], [2], [1], [1], [0, 0, 0, 1, 1, 1], [0], [0]>} : vector<1x8x32xf32>, vector<1x8x32xf32>, vector<1x8x8xf32> -> vector<1x8x8xf32>
    %c0_6 = arith.constant 0 : index
    %c0_7 = arith.constant 0 : index
    %c0_8 = arith.constant 0 : index
    %6 = vector.load %arg7[%c0_6, %c0_7, %c0_8] : memref<1x8x1xf32, #tpu.memory_space<vmem>>, vector<1x8x1xf32>
    %cst_9 = arith.constant dense<0xFF800000> : vector<1x8xf32>
    %7 = vector.multi_reduction <maximumf>, %5, %cst_9 [2] : vector<1x8x8xf32> to vector<1x8xf32>
    %8 = vector.shape_cast %7 : vector<1x8xf32> to vector<1x8x1xf32>
    %9 = arith.maximumf %6, %8 : vector<1x8x1xf32>
    %10 = arith.subf %6, %9 : vector<1x8x1xf32>
    %11 = math.exp %10 : vector<1x8x1xf32>
    %12 = vector.broadcast %9 : vector<1x8x1xf32> to vector<1x8x8xf32>
    %13 = arith.subf %5, %12 : vector<1x8x8xf32>
    %14 = math.exp %13 : vector<1x8x8xf32>
    %c0_10 = arith.constant 0 : index
    %c0_11 = arith.constant 0 : index
    %c0_12 = arith.constant 0 : index
    %15 = vector.load %arg8[%c0_10, %c0_11, %c0_12] : memref<1x8x1xf32, #tpu.memory_space<vmem>>, vector<1x8x1xf32>
    %16 = arith.mulf %11, %15 : vector<1x8x1xf32>
    %cst_13 = arith.constant dense<0.000000e+00> : vector<1x8xf32>
    %17 = vector.multi_reduction <add>, %14, %cst_13 [2] : vector<1x8x8xf32> to vector<1x8xf32>
    %18 = vector.shape_cast %17 : vector<1x8xf32> to vector<1x8x1xf32>
    %19 = arith.addf %16, %18 : vector<1x8x1xf32>
    %c0_14 = arith.constant 0 : index
    %c0_15 = arith.constant 0 : index
    %c0_16 = arith.constant 0 : index
    %20 = vector.load %arg8[%c0_14, %c0_15, %c0_16] : memref<1x8x1xf32, #tpu.memory_space<vmem>>, vector<1x8x1xf32>
    tpu.vector_store %arg8[%c0_14, %c0_15, %c0_16], %19 {strides = array<i32>} : memref<1x8x1xf32, #tpu.memory_space<vmem>>, vector<1x8x1xf32>,
    %c0_17 = arith.constant 0 : index
    %c0_18 = arith.constant 0 : index
    %c0_19 = arith.constant 0 : index
    %21 = vector.load %arg3[%c0_17, %c0_18, %c0_19] : memref<1x8x32xf32, #tpu.memory_space<vmem>>, vector<1x8x32xf32>
    %cst_20 = arith.constant dense<0.000000e+00> : vector<1x8x32xf32>
    %22 = tpu.matmul %14, %21, %cst_20 {dimension_numbers = #tpu.dot_dimension_numbers<[2], [1], [1], [2], [0, 0, 0, 1, 1, 2], [0], [0]>} : vector<1x8x8xf32>, vector<1x8x32xf32>, vector<1x8x32xf32> -> vector<1x8x32xf32>
    %c0_21 = arith.constant 0 : index
    %c0_22 = arith.constant 0 : index
    %c0_23 = arith.constant 0 : index
    %23 = vector.load %arg9[%c0_21, %c0_22, %c0_23] : memref<1x8x32xf32, #tpu.memory_space<vmem>>, vector<1x8x32xf32>
    %24 = vector.broadcast %11 : vector<1x8x1xf32> to vector<1x8x32xf32>
    %25 = arith.mulf %24, %23 : vector<1x8x32xf32>
    %26 = arith.addf %25, %22 : vector<1x8x32xf32>
    %c0_24 = arith.constant 0 : index
    %c0_25 = arith.constant 0 : index
    %c0_26 = arith.constant 0 : index
    %27 = vector.load %arg9[%c0_24, %c0_25, %c0_26] : memref<1x8x32xf32, #tpu.memory_space<vmem>>, vector<1x8x32xf32>
    tpu.vector_store %arg9[%c0_24, %c0_25, %c0_26], %26 {strides = array<i32>} : memref<1x8x32xf32, #tpu.memory_space<vmem>>, vector<1x8x32xf32>,
    %c0_27 = arith.constant 0 : index
    %c0_28 = arith.constant 0 : index
    %c0_29 = arith.constant 0 : index
    %28 = vector.load %arg7[%c0_27, %c0_28, %c0_29] : memref<1x8x1xf32, #tpu.memory_space<vmem>>, vector<1x8x1xf32>
    tpu.vector_store %arg7[%c0_27, %c0_28, %c0_29], %9 {strides = array<i32>} : memref<1x8x1xf32, #tpu.memory_space<vmem>>, vector<1x8x1xf32>,
    %c0_i32_30 = arith.constant 0 : i32
    %29 = arith.cmpi eq, %arg1, %c0_i32_30 : i32
    %30 = arith.extui %29 : i1 to i32
    %c0_i32_31 = arith.constant 0 : i32
    %31 = arith.cmpi ne, %30, %c0_i32_31 : i32
    scf.if %31 {
      %c0_32 = arith.constant 0 : index
      %c0_33 = arith.constant 0 : index
      %c0_34 = arith.constant 0 : index
      %32 = vector.load %arg8[%c0_32, %c0_33, %c0_34] : memref<1x8x1xf32, #tpu.memory_space<vmem>>, vector<1x8x1xf32>
      %33 = tpu.reciprocal %32 : vector<1x8x1xf32> -> vector<1x8x1xf32>
      %cst_35 = arith.constant 0.000000e+00 : f32
      %34 = vector.broadcast %cst_35 : f32 to vector<1x8x1xf32>
      %35 = arith.cmpf ogt, %32, %34 : vector<1x8x1xf32>
      %cst_36 = arith.constant 0.000000e+00 : f32
      %36 = vector.broadcast %cst_36 : f32 to vector<1x8x1xf32>
      %37 = arith.select %35, %33, %36 : vector<1x8x1xi1>, vector<1x8x1xf32>
      %c0_37 = arith.constant 0 : index
      %c0_38 = arith.constant 0 : index
      %c0_39 = arith.constant 0 : index
      %38 = vector.load %arg9[%c0_37, %c0_38, %c0_39] : memref<1x8x32xf32, #tpu.memory_space<vmem>>, vector<1x8x32xf32>
      %39 = vector.broadcast %37 : vector<1x8x1xf32> to vector<1x8x32xf32>
      %40 = arith.mulf %38, %39 : vector<1x8x32xf32>
      %c0_40 = arith.constant 0 : index
      %c0_41 = arith.constant 0 : index
      %c0_42 = arith.constant 0 : index
      %41 = vector.load %arg5[%c0_40, %c0_41, %c0_42] : memref<1x8x32xf32, #tpu.memory_space<vmem>>, vector<1x8x32xf32>
      tpu.vector_store %arg5[%c0_40, %c0_41, %c0_42], %40 {strides = array<i32>} : memref<1x8x32xf32, #tpu.memory_space<vmem>>, vector<1x8x32xf32>,
    } else {
    }
    return
  }
  func.func @transform_0(%arg0: i32, %arg1: i32) -> (i32, i32, i32) {
    %c0_i32 = arith.constant 0 : i32
    %c0_i32_0 = arith.constant 0 : i32
    %c0_i32_1 = arith.constant 0 : i32
    return %arg0, %c0_i32, %c0_i32_0 : i32, i32, i32
  }
  func.func @transform_1(%arg0: i32, %arg1: i32) -> (i32, i32, i32) {
    %c0_i32 = arith.constant 0 : i32
    %c0_i32_0 = arith.constant 0 : i32
    return %arg0, %arg1, %c0_i32 : i32, i32, i32
  }
  func.func @transform_2(%arg0: i32, %arg1: i32) -> (i32, i32) {
    %c0_i32 = arith.constant 0 : i32
    %c0_i32_0 = arith.constant 0 : i32
    %c0_i32_1 = arith.constant 0 : i32
    return %c0_i32, %c0_i32_0 : i32, i32
  }
  func.func @transform_3(%arg0: i32, %arg1: i32) -> (i32, i32, i32) {
    %c0_i32 = arith.constant 0 : i32
    %c0_i32_0 = arith.constant 0 : i32
    %c0_i32_1 = arith.constant 0 : i32
    return %arg0, %c0_i32, %c0_i32_0 : i32, i32, i32
  }
}

</mosaic_0001>

<llo_original>
// kernel: attention_general.1
$region0: #{attention_general.1}
  #allocation0 [shape = 'u32[]', space=smem, size = 0x4, offset = 0x4, fixed_abs, tag = 'smem constant byte address 0x4 - core index']
  #allocation1 [shape = 'u32[144,128]{1,0:T(1,128)}', space=vmem, size = 0x12000, scoped, tag = 'internal scratch']
  #allocation2 [shape = 'f32[1,8,32]{2,1,0:T(8,128)}', space=vmem, size = 0x1000, scoped, tag = 'scratch operand']
  #allocation3 [shape = 'f32[1,8,1]{2,1,0:T(8,128)}', space=vmem, size = 0x1000, scoped, tag = 'scratch operand']
  #allocation4 [shape = 'f32[1,8,1]{2,1,0:T(8,128)}', space=vmem, size = 0x1000, scoped, tag = 'scratch operand']
  #allocation5 [shape = 'f32[1,8,32]{2,1,0:T(8,128)}', space=vmem, size = 0x1000, scoped, tag = 'scratch operand']
  %s0 = inlined_call_operand.hbm [shape: f32[2,8,32], index: 0, kind: input, shape index: {}]
  %s1 = inlined_call_operand.hbm [shape: f32[2,8,32], index: 1, kind: input, shape index: {}]
  %s2 = inlined_call_operand.hbm [shape: f32[32,32], index: 2, kind: input, shape index: {}]
  %s3 = inlined_call_operand.hbm [shape: f32[2,8,32], index: 3, kind: output, shape index: {}]
  %s4 = sld [smem:[#allocation0]]
  $region65: #{attention_general.1} parent=0
    _
  %s6 = ssub.s32 1, %s4
  %s7 = scalar_select 0, %s6, %s4
  $region1: #{attention_general.1} parent=0
    #allocation6 [shape = 'u8[8192]{0}', space=vmem, size = 0x2000, scoped, tag = 'input window, operand 0']
    #allocation7 [shape = 's32[2]{0}', space=sflag, size = 0x8, scoped, tag = 'scoped memory for attention_general.1']
    #allocation8 [shape = 's32[2]{0}', space=sflag, size = 0x8, scoped, tag = 'scoped memory for attention_general.1']
    #allocation9 [shape = 'u8[8192]{0}', space=vmem, size = 0x2000, scoped, tag = 'input window, operand 1']
    #allocation10 [shape = 's32[2]{0}', space=sflag, size = 0x8, scoped, tag = 'scoped memory for attention_general.1']
    #allocation11 [shape = 'u8[16384]{0}', space=vmem, size = 0x4000, scoped, tag = 'input window, operand 2, single buffered']
    #allocation12 [shape = 'u8[8192]{0}', space=vmem, size = 0x2000, scoped, tag = 'output window, operand 0']
    %8 = vsyncpa [#allocation7], 0
    %s9 = scalar_lea.sflag [#allocation7], 1
    %10 = vsyncpa %s9, 0
    %11 = vsyncpa [#allocation10], 0
    %s12 = scalar_lea.sflag [#allocation10], 1
    %13 = vsyncpa %s12, 0
    %14 = vsyncpa [#allocation8], 0
    %s15 = scalar_lea.sflag [#allocation8], 1
    %16 = vsyncpa %s15, 0
    loop: start=0, step=1, limit=4
    $region2: #{attention_general.1} parent=1 // loop_pre_header
      _
    $region3: #{attention_general.1} parent=1 // loop_header
      %s18 = sphi 0, %s22
      %p19 = scmp.ge.s32.totalorder %s18, 4
      %s25 = sphi 0, %s37
      %s26 = sphi 0, %s33
      %s27 = sphi 0, %s25
      %s28 = sphi 0, %s26
      %s29 = sphi 0, %s27
      %s30 = sphi 0, %s28
      %s40 = sphi 0, %s42
      %s43 = sphi 0, %s40
      %s44 = sphi 0, %s43
      %s60 = sphi 0, %s44
      %s68 = sphi 0, %s70
      %s71 = sphi 0, %s68
      %s72 = sphi 0, %s71
      %s88 = sphi 0, %s72
      %s92 = sphi 0, %s92
      %s94 = sphi 0, %s92
      %s95 = sphi 0, %s94
      %s109 = sphi 0, %s95
      %s115 = sphi 0, %s117
      %s118 = sphi 0, %s115
      %s119 = sphi 0, %s118
      %s135 = sphi 0, %s119
    $region4: #{attention_general.1} parent=1 // loop_header_branch
      %21 = sbr.rel (%p19) target = $region8
    $region5: #{attention_general.1} parent=1 // loop_body
      %s23 = ssub.s32 %s18, 1
      %s24 = ssub.s32 %s18, 2
      %s31 = sadd.s32 1, %s26
      %p32 = scmp.ge.s32.totalorder %s31, 1
      %s33 = scalar_select %p32, 0, %s31
      %s34 = sadd.s32 1, %s25
      %s35 = scalar_select %p32, %s34, %s25
      %p36 = scmp.ge.s32.totalorder %s35, 2
      %s37 = scalar_select %p36, 0, %s35
      %s38 = ssub.s32 %s25, %s37
      %p39 = scmp.eq.s32.totalorder %s38, 0
      %s41 = sadd.s32 %s40, 1
      %s42 = scalar_select %p39, %s40, %s41
      %p45 = pneg %p39
      %p46 = scmp.eq.s32.totalorder %s18, 1
      %p47 = por %p45, %p46
      %p48 = scmp.ne.s32.totalorder %s40, %s43
      %p49 = scmp.eq.s32.totalorder %s18, 0
      %p50 = por %p48, %p49
      %p51 = scmp.ne.s32.totalorder %s40, %s43
      %p52 = scmp.eq.s32.totalorder %s23, 1
      %p53 = por %p51, %p52
      %p54 = scmp.ne.s32.totalorder %s43, %s44
      %p55 = scmp.eq.s32.totalorder %s23, 0
      %p56 = por %p54, %p55
      %p57 = scmp.ne.s32.totalorder %s43, %s44
      %p58 = scmp.eq.s32.totalorder %s24, 1
      %p59 = por %p57, %p58
      %p61 = scmp.ne.s32.totalorder %s44, %s60
      %p62 = scmp.eq.s32.totalorder %s24, 0
      %p63 = por %p61, %p62
      %s64 = ssub.s32 %s25, %s37
      %s65 = ssub.s32 %s26, %s33
      %s66 = sor.u32 %s64, %s65
      %p67 = scmp.eq.s32.totalorder %s66, 0
      %s69 = sadd.s32 %s68, 1
      %s70 = scalar_select %p67, %s68, %s69
      %p73 = pneg %p67
      %p74 = scmp.eq.s32.totalorder %s18, 1
      %p75 = por %p73, %p74
      %p76 = scmp.ne.s32.totalorder %s68, %s71
      %p77 = scmp.eq.s32.totalorder %s18, 0
      %p78 = por %p76, %p77
      %p79 = scmp.ne.s32.totalorder %s68, %s71
      %p80 = scmp.eq.s32.totalorder %s23, 1
      %p81 = por %p79, %p80
      %p82 = scmp.ne.s32.totalorder %s71, %s72
      %p83 = scmp.eq.s32.totalorder %s23, 0
      %p84 = por %p82, %p83
      %p85 = scmp.ne.s32.totalorder %s71, %s72
      %p86 = scmp.eq.s32.totalorder %s24, 1
      %p87 = por %p85, %p86
      %p89 = scmp.ne.s32.totalorder %s72, %s88
      %p90 = scmp.eq.s32.totalorder %s24, 0
      %p91 = por %p89, %p90
      %s93 = sadd.s32 %s92, 1
      %p96 = scmp.eq.s32.totalorder %s18, 1
      %p97 = scmp.ne.s32.totalorder %s92, %s94
      %p98 = scmp.eq.s32.totalorder %s18, 0
      %p99 = por %p97, %p98
      %p100 = scmp.ne.s32.totalorder %s92, %s94
      %p101 = scmp.eq.s32.totalorder %s23, 1
      %p102 = por %p100, %p101
      %p103 = scmp.ne.s32.totalorder %s94, %s95
      %p104 = scmp.eq.s32.totalorder %s23, 0
      %p105 = por %p103, %p104
      %p106 = scmp.ne.s32.totalorder %s94, %s95
      %p107 = scmp.eq.s32.totalorder %s24, 1
      %p108 = por %p106, %p107
      %p110 = scmp.ne.s32.totalorder %s95, %s109
      %p111 = scmp.eq.s32.totalorder %s24, 0
      %p112 = por %p110, %p111
      %s113 = ssub.s32 %s25, %s37
      %p114 = scmp.eq.s32.totalorder %s113, 0
      %s116 = sadd.s32 %s115, 1
      %s117 = scalar_select %p114, %s115, %s116
      %p120 = pneg %p114
      %p121 = scmp.eq.s32.totalorder %s18, 1
      %p122 = por %p120, %p121
      %p123 = scmp.ne.s32.totalorder %s115, %s118
      %p124 = scmp.eq.s32.totalorder %s18, 0
      %p125 = por %p123, %p124
      %p126 = scmp.ne.s32.totalorder %s115, %s118
      %p127 = scmp.eq.s32.totalorder %s23, 1
      %p128 = por %p126, %p127
      %p129 = scmp.ne.s32.totalorder %s118, %s119
      %p130 = scmp.eq.s32.totalorder %s23, 0
      %p131 = por %p129, %p130
      %p132 = scmp.ne.s32.totalorder %s118, %s119
      %p133 = scmp.eq.s32.totalorder %s24, 1
      %p134 = por %p132, %p133
      %p136 = scmp.ne.s32.totalorder %s119, %s135
      %p137 = scmp.eq.s32.totalorder %s24, 0
      %p138 = por %p136, %p137
      %p139 = scmp.le.s32.totalorder 1, %s18
      %p140 = scmp.lt.s32.totalorder %s18, 3
      %p141 = pnand %p139, %p140
      %p142 = pneg %p141
      // Predicated region
      $region9: #{attention_general.1} parent=5 // pred_check
        _
      $region10: #{attention_general.1} parent=5 // pred_check_branch
        %144 = sbr.rel (%p141) target = $region12
      $region11: #{attention_general.1} parent=5 // pred_region
        %s145 = ssub.s32 %s18, 1
        // Predicated region
        $region13: #{attention_general.1} parent=11 // pred_check
          %p146 = pneg %p105
        $region14: #{attention_general.1} parent=11 // pred_check_branch
          %148 = sbr.rel (%p146) target = $region16
        $region15: #{attention_general.1} parent=11 // pred_region
          %s150 = ssub.s32 512, 512
          %151 = vsyncadd [#allocation10], %s150
          %s152 = sshll.u32 [#allocation11], 4
          %s153 = int_to_ptr.vmem [resolvable:$true] %s152
          %158 = dma.hbm_to_vmem [thread:$0]  %s2, 512, %s153, [#allocation10], 128, 128, 8
        $region16: #{attention_general.1} parent=11 // pred_fallthru
          _
      $region12: #{attention_general.1} parent=5 // pred_fallthru
        _
      %p159 = scmp.lt.s32.totalorder %s18, 2
      // Predicated region
      $region17: #{attention_general.1} parent=5 // pred_check
        %p160 = pneg %p159
      $region18: #{attention_general.1} parent=5 // pred_check_branch
        %162 = sbr.rel (%p160) target = $region20
      $region19: #{attention_general.1} parent=5 // pred_region
        // Predicated region
        $region21: #{attention_general.1} parent=19 // pred_check
          %p163 = pneg %p50
        $region22: #{attention_general.1} parent=19 // pred_check_branch
          %165 = sbr.rel (%p163) target = $region24
        $region23: #{attention_general.1} parent=19 // pred_region
          %s166 = sand.u32 %s40, 1
          %s167 = scalar_lea.sflag [#allocation7], %s166
          %s168 = sand.u32 %s40, 1
          %s169 = smul.addr %s168, 8
          %s170 = scalar_lea.vmem [#allocation6], %s169
          %s172 = ssub.s32 128, 128
          %173 = vsyncadd %s167, %s172
          %s174 = smul.addr %s25, 128
          %s175 = scalar_lea.hbm %s0, %s174
          %s177 = sshll.u32 %s170, 4
          %s178 = int_to_ptr.vmem [resolvable:$true] %s177
          %180 = dma.hbm_to_vmem [thread:$0]  %s175, 128, %s178, %s167
        $region24: #{attention_general.1} parent=19 // pred_fallthru
          _
        // Predicated region
        $region25: #{attention_general.1} parent=19 // pred_check
          %p181 = pneg %p78
        $region26: #{attention_general.1} parent=19 // pred_check_branch
          %183 = sbr.rel (%p181) target = $region28
        $region27: #{attention_general.1} parent=19 // pred_region
          %s184 = sand.u32 %s18, 1
          %s185 = scalar_lea.sflag [#allocation10], %s184
          %s186 = sand.u32 %s68, 1
          %s187 = smul.addr %s186, 8
          %s188 = scalar_lea.vmem [#allocation9], %s187
          %s190 = ssub.s32 128, 128
          %191 = vsyncadd %s185, %s190
          %s192 = sadd.s32 %s26, %s25
          %s193 = smul.addr %s192, 128
          %s194 = scalar_lea.hbm %s1, %s193
          %s196 = sshll.u32 %s188, 4
          %s197 = int_to_ptr.vmem [resolvable:$true] %s196
          %199 = dma.hbm_to_vmem [thread:$0]  %s194, 128, %s197, %s185
        $region28: #{attention_general.1} parent=19 // pred_fallthru
          _
      $region20: #{attention_general.1} parent=5 // pred_fallthru
        _
      %p200 = scmp.le.s32.totalorder 1, %s18
      %p201 = scmp.lt.s32.totalorder %s18, 3
      %p202 = pnand %p200, %p201
      %p203 = pneg %p202
      // Predicated region
      $region29: #{attention_general.1} parent=5 // pred_check
        _
      $region30: #{attention_general.1} parent=5 // pred_check_branch
        %205 = sbr.rel (%p202) target = $region32
      $region31: #{attention_general.1} parent=5 // pred_region
        %s206 = ssub.s32 %s18, 1
        %s207 = sand.u32 %s43, 1
        %s208 = scalar_lea.sflag [#allocation7], %s207
        %s209 = sand.u32 %s43, 1
        %s210 = smul.addr %s209, 8
        %s211 = scalar_lea.vmem [#allocation6], %s210
        // Predicated region
        $region33: #{attention_general.1} parent=31 // pred_check
          %p212 = pneg %p56
        $region34: #{attention_general.1} parent=31 // pred_check_branch
          %214 = sbr.rel (%p212) target = $region36
        $region35: #{attention_general.1} parent=31 // pred_region
          %215 = dma.done %s208, 128
        $region36: #{attention_general.1} parent=31 // pred_fallthru
          _
        %s216 = sand.u32 %s23, 1
        %s217 = scalar_lea.sflag [#allocation10], %s216
        %s218 = sand.u32 %s71, 1
        %s219 = smul.addr %s218, 8
        %s220 = scalar_lea.vmem [#allocation9], %s219
        // Predicated region
        $region37: #{attention_general.1} parent=31 // pred_check
          %p221 = pneg %p84
        $region38: #{attention_general.1} parent=31 // pred_check_branch
          %223 = sbr.rel (%p221) target = $region40
        $region39: #{attention_general.1} parent=31 // pred_region
          %224 = dma.done %s217, 128
        $region40: #{attention_general.1} parent=31 // pred_fallthru
          _
        // Predicated region
        $region41: #{attention_general.1} parent=31 // pred_check
          %p225 = pneg %p105
        $region42: #{attention_general.1} parent=31 // pred_check_branch
          %227 = sbr.rel (%p225) target = $region44
        $region43: #{attention_general.1} parent=31 // pred_region
          %228 = dma.done [#allocation10], 512
        $region44: #{attention_general.1} parent=31 // pred_fallthru
          _
        %s229 = sand.u32 %s43, 1
        %s230 = scalar_lea.sflag [#allocation7], %s229
        %s231 = sand.u32 %s43, 1
        %s232 = smul.addr %s231, 8
        %s233 = scalar_lea.vmem [#allocation6], %s232
        %p234 = pneg %p56
        %p235 = pneg %p53
        %s236 = sand.u32 %s23, 1
        %s237 = scalar_lea.sflag [#allocation10], %s236
        %s238 = sand.u32 %s71, 1
        %s239 = smul.addr %s238, 8
        %s240 = scalar_lea.vmem [#allocation9], %s239
        %p241 = pneg %p84
        %p242 = pneg %p81
        %p243 = pneg %p105
        %p244 = pneg %p102
        %p245 = pneg %p131
        %p246 = pneg %p128
        %s247 = sand.u32 %s118, 1
        %s248 = scalar_lea.sflag [#allocation8], %s247
        %s249 = sand.u32 %s118, 1
        %s250 = smul.addr %s249, 8
        %s251 = scalar_lea.vmem [#allocation12], %s250
        %p252 = scmp.eq.s32.totalorder %s28, 0
        // Predicated region
        $region45: #{attention_general.1} parent=31 // pred_check
          %p253 = pneg %p252
        $region46: #{attention_general.1} parent=31 // pred_check_branch
          %255 = sbr.rel (%p253) target = $region48
        $region47: #{attention_general.1} parent=31 // pred_region
          %v256 = vld [vmem:[%s211] sm:$0xff]
          %v257 = vld [vmem:[#allocation11] sm:$0xff]
          %v258 = vld [vmem:[#allocation11 + $0x8] sm:$0xff]
          %v259 = vld [vmem:[#allocation11 + $0x10] sm:$0xff]
          %v260 = vld [vmem:[#allocation11 + $0x18] sm:$0xff]
          %vm261 = vcmask 261120
          %v263 = vsel %vm261, %v256, 0
          %265 = vmatprep.subr.mxu0 0.0
          %266 = vmatpush1.msra.mxu0 0.0
          %267 = vmatprep.subr.mxu0 0.0
          %268 = vmatpush1.msra.mxu0 0.0
          %269 = vmatprep.subr.mxu0 0.0
          %270 = vmatpush1.msra.mxu0 0.0
          %271 = vmatprep.subr.mxu0 0.0
          %272 = vmatpush1.msra.mxu0 0.0
          %273 = vmatprep.subr.mxu0 0.0
          %274 = vmatpush1.msra.mxu0 0.0
          %275 = vmatprep.subr.mxu0 0.0
          %276 = vmatpush1.msra.mxu0 0.0
          %277 = vmatprep.subr.mxu0 0.0
          %278 = vmatpush1.msra.mxu0 0.0
          %279 = vmatprep.subr.mxu0 0.0
          %280 = vmatpush1.msra.mxu0 0.0
          %281 = vmatprep.subr.mxu0 0.0
          %282 = vmatpush1.msra.mxu0 0.0
          %283 = vmatprep.subr.mxu0 0.0
          %284 = vmatpush1.msra.mxu0 0.0
          %285 = vmatprep.subr.mxu0 0.0
          %286 = vmatpush1.msra.mxu0 0.0
          %287 = vmatprep.subr.mxu0 0.0
          %288 = vmatpush1.msra.mxu0 0.0
          %289 = vmatprep.subr.mxu0 0.0
          %290 = vmatpush1.msra.mxu0 %v260
          %291 = vmatprep.subr.mxu0 0.0
          %292 = vmatpush1.msra.mxu0 %v259
          %293 = vmatprep.subr.mxu0 0.0
          %294 = vmatpush1.msra.mxu0 %v258
          %295 = vmatprep.subr.mxu0 0.0
          %296 = vmatpush1.msra.mxu0 %v257
          %297 = vmatprep.subr.mxu0 0.0
          %298 = vmatpush2.msra.mxu0 0.0
          %299 = vmatprep.subr.mxu0 0.0
          %300 = vmatpush2.msra.mxu0 0.0
          %301 = vmatprep.subr.mxu0 0.0
          %302 = vmatpush2.msra.mxu0 0.0
          %303 = vmatprep.subr.mxu0 0.0
          %304 = vmatpush2.msra.mxu0 0.0
          %305 = vmatprep.subr.mxu0 0.0
          %306 = vmatpush2.msra.mxu0 0.0
          %307 = vmatprep.subr.mxu0 0.0
          %308 = vmatpush2.msra.mxu0 0.0
          %309 = vmatprep.subr.mxu0 0.0
          %310 = vmatpush2.msra.mxu0 0.0
          %311 = vmatprep.subr.mxu0 0.0
          %312 = vmatpush2.msra.mxu0 0.0
          %313 = vmatprep.subr.mxu0 0.0
          %314 = vmatpush2.msra.mxu0 0.0
          %315 = vmatprep.subr.mxu0 0.0
          %316 = vmatpush2.msra.mxu0 0.0
          %317 = vmatprep.subr.mxu0 0.0
          %318 = vmatpush2.msra.mxu0 0.0
          %319 = vmatprep.subr.mxu0 0.0
          %320 = vmatpush2.msra.mxu0 0.0
          %321 = vmatprep.subr.mxu0 0.0
          %322 = vmatpush2.msra.mxu0 0.0
          %323 = vmatprep.subr.mxu0 0.0
          %324 = vmatpush2.msra.mxu0 0.0
          %325 = vmatprep.subr.mxu0 0.0
          %326 = vmatpush2.msra.mxu0 0.0
          %327 = vmatprep.subr.mxu0 0.0
          %328 = vmatpush2.msra.mxu0 0.0
          %329 = vmatprep.mubr.f32.mxu0 0.0
          %330 = vmatmul.mubr.f32.gmra.mxu0 %v263
          %v331 = vpop.f32.mrf.mxu0
          %v332 = vadd.f32 0.0, %v331
          %v333 = vpop.f32.mrf.mxu0
          %334 = vdwg.mxu0
          %335 = vst.msk [vmem:[#allocation2] sm:$0xff] %vm261, %v332
          %vm336 = vcmask 7168
          %337 = vst.msk [vmem:[#allocation3] sm:$0xff] %vm336, -inf
          %338 = vst.msk [vmem:[#allocation4] sm:$0xff] %vm336, 0.0
          %339 = vst.msk [vmem:[#allocation5] sm:$0xff] %vm261, 0.0
        $region48: #{attention_general.1} parent=31 // pred_fallthru
          _
        %v340 = vld [vmem:[#allocation2] sm:$0xff]
        %v341 = vld [vmem:[%s220] sm:$0xff]
        %vm342 = vcmask 261120
        %v344 = vsel %vm342, %v340, 0
        %v347 = vsel %vm342, %v341, 0
        %349 = vmatprep.subr.mxu0 0.0
        %350 = vmatpush1.xpose.msra.mxu0 0.0
        %351 = vmatprep.subr.mxu0 0.0
        %352 = vmatpush1.xpose.msra.mxu0 0.0
        %353 = vmatprep.subr.mxu0 0.0
        %354 = vmatpush1.xpose.msra.mxu0 0.0
        %355 = vmatprep.subr.mxu0 0.0
        %356 = vmatpush1.xpose.msra.mxu0 0.0
        %357 = vmatprep.subr.mxu0 0.0
        %358 = vmatpush1.xpose.msra.mxu0 0.0
        %359 = vmatprep.subr.mxu0 0.0
        %360 = vmatpush1.xpose.msra.mxu0 0.0
        %361 = vmatprep.subr.mxu0 0.0
        %362 = vmatpush1.xpose.msra.mxu0 0.0
        %363 = vmatprep.subr.mxu0 0.0
        %364 = vmatpush1.xpose.msra.mxu0 0.0
        %365 = vmatprep.subr.mxu0 0.0
        %366 = vmatpush1.xpose.msra.mxu0 0.0
        %367 = vmatprep.subr.mxu0 0.0
        %368 = vmatpush1.xpose.msra.mxu0 0.0
        %369 = vmatprep.subr.mxu0 0.0
        %370 = vmatpush1.xpose.msra.mxu0 0.0
        %371 = vmatprep.subr.mxu0 0.0
        %372 = vmatpush1.xpose.msra.mxu0 0.0
        %373 = vmatprep.subr.mxu0 0.0
        %374 = vmatpush1.xpose.msra.mxu0 0.0
        %375 = vmatprep.subr.mxu0 0.0
        %376 = vmatpush1.xpose.msra.mxu0 0.0
        %377 = vmatprep.subr.mxu0 0.0
        %378 = vmatpush1.xpose.msra.mxu0 0.0
        %379 = vmatprep.subr.mxu0 0.0
        %380 = vmatpush1.xpose.msra.mxu0 %v347
        %381 = vmatprep.subr.mxu0 0.0
        %382 = vmatpush2.xpose.msra.mxu0 0.0
        %383 = vmatprep.subr.mxu0 0.0
        %384 = vmatpush2.xpose.msra.mxu0 0.0
        %385 = vmatprep.subr.mxu0 0.0
        %386 = vmatpush2.xpose.msra.mxu0 0.0
        %387 = vmatprep.subr.mxu0 0.0
        %388 = vmatpush2.xpose.msra.mxu0 0.0
        %389 = vmatprep.subr.mxu0 0.0
        %390 = vmatpush2.xpose.msra.mxu0 0.0
        %391 = vmatprep.subr.mxu0 0.0
        %392 = vmatpush2.xpose.msra.mxu0 0.0
        %393 = vmatprep.subr.mxu0 0.0
        %394 = vmatpush2.xpose.msra.mxu0 0.0
        %395 = vmatprep.subr.mxu0 0.0
        %396 = vmatpush2.xpose.msra.mxu0 0.0
        %397 = vmatprep.subr.mxu0 0.0
        %398 = vmatpush2.xpose.msra.mxu0 0.0
        %399 = vmatprep.subr.mxu0 0.0
        %400 = vmatpush2.xpose.msra.mxu0 0.0
        %401 = vmatprep.subr.mxu0 0.0
        %402 = vmatpush2.xpose.msra.mxu0 0.0
        %403 = vmatprep.subr.mxu0 0.0
        %404 = vmatpush2.xpose.msra.mxu0 0.0
        %405 = vmatprep.subr.mxu0 0.0
        %406 = vmatpush2.xpose.msra.mxu0 0.0
        %407 = vmatprep.subr.mxu0 0.0
        %408 = vmatpush2.xpose.msra.mxu0 0.0
        %409 = vmatprep.subr.mxu0 0.0
        %410 = vmatpush2.xpose.msra.mxu0 0.0
        %411 = vmatprep.subr.mxu0 0.0
        %412 = vmatpush2.xpose.msra.mxu0 0.0
        %413 = vmatprep.mubr.f32.mxu0 0.0
        %414 = vmatmul.mubr.f32.gmra.mxu0 %v344
        %v415 = vpop.f32.mrf.mxu0
        %v416 = vadd.f32 0.0, %v415
        %v417 = vpop.f32.mrf.mxu0
        %418 = vdwg.mxu0
        %v419 = vld [vmem:[#allocation3] sm:$0xff]
        %vm420 = vcmask 64512
        %v421 = vsel %vm420, %v416, -inf
        %422 = vmax.xlane.f32.xlu0 %v421
        %v423 = vpop.xlane.xlu0 %422
        %v424 = vmax.f32 %v419, %v423
        %v425 = vsub.f32 %v419, %v424
        %v426 = vmul.f32 %v425, 1.442695
        %v427 = vpow.pop %v426
        %429 = vset.pattern.permute.xlu0 0
        %430 = vperm.xlu0 %429, %v424
        %v431 = vpop.permute.xlu0 %430
        %v433 = vsub.f32 %v416, %v431
        %v434 = vmul.f32 %v433, 1.442695
        %v435 = vpow.pop %v434
        %v436 = vld [vmem:[#allocation4] sm:$0xff]
        %v437 = vmul.f32 %v427, %v436
        %v438 = vsel %vm420, %v435, 0.0
        %439 = vadd.xlane.f32.xlu0 %v438
        %v440 = vpop.xlane.xlu0 %439
        %v441 = vadd.f32 %v437, %v440
        %vm442 = vcmask 7168
        %443 = vst.msk [vmem:[#allocation4] sm:$0xff] %vm442, %v441
        %v444 = vld [vmem:[%s220] sm:$0xff]
        %v446 = vsel %vm420, %v435, 0
        %448 = vmatprep.subr.mxu0 0.0
        %449 = vmatpush1.msra.mxu0 0.0
        %450 = vmatprep.subr.mxu0 0.0
        %451 = vmatpush1.msra.mxu0 0.0
        %452 = vmatprep.subr.mxu0 0.0
        %453 = vmatpush1.msra.mxu0 0.0
        %454 = vmatprep.subr.mxu0 0.0
        %455 = vmatpush1.msra.mxu0 0.0
        %456 = vmatprep.subr.mxu0 0.0
        %457 = vmatpush1.msra.mxu0 0.0
        %458 = vmatprep.subr.mxu0 0.0
        %459 = vmatpush1.msra.mxu0 0.0
        %460 = vmatprep.subr.mxu0 0.0
        %461 = vmatpush1.msra.mxu0 0.0
        %462 = vmatprep.subr.mxu0 0.0
        %463 = vmatpush1.msra.mxu0 0.0
        %464 = vmatprep.subr.mxu0 0.0
        %465 = vmatpush1.msra.mxu0 0.0
        %466 = vmatprep.subr.mxu0 0.0
        %467 = vmatpush1.msra.mxu0 0.0
        %468 = vmatprep.subr.mxu0 0.0
        %469 = vmatpush1.msra.mxu0 0.0
        %470 = vmatprep.subr.mxu0 0.0
        %471 = vmatpush1.msra.mxu0 0.0
        %472 = vmatprep.subr.mxu0 0.0
        %473 = vmatpush1.msra.mxu0 0.0
        %474 = vmatprep.subr.mxu0 0.0
        %475 = vmatpush1.msra.mxu0 0.0
        %476 = vmatprep.subr.mxu0 0.0
        %477 = vmatpush1.msra.mxu0 0.0
        %478 = vmatprep.subr.mxu0 0.0
        %479 = vmatpush1.msra.mxu0 %v444
        %480 = vmatprep.subr.mxu0 0.0
        %481 = vmatpush2.msra.mxu0 0.0
        %482 = vmatprep.subr.mxu0 0.0
        %483 = vmatpush2.msra.mxu0 0.0
        %484 = vmatprep.subr.mxu0 0.0
        %485 = vmatpush2.msra.mxu0 0.0
        %486 = vmatprep.subr.mxu0 0.0
        %487 = vmatpush2.msra.mxu0 0.0
        %488 = vmatprep.subr.mxu0 0.0
        %489 = vmatpush2.msra.mxu0 0.0
        %490 = vmatprep.subr.mxu0 0.0
        %491 = vmatpush2.msra.mxu0 0.0
        %492 = vmatprep.subr.mxu0 0.0
        %493 = vmatpush2.msra.mxu0 0.0
        %494 = vmatprep.subr.mxu0 0.0
        %495 = vmatpush2.msra.mxu0 0.0
        %496 = vmatprep.subr.mxu0 0.0
        %497 = vmatpush2.msra.mxu0 0.0
        %498 = vmatprep.subr.mxu0 0.0
        %499 = vmatpush2.msra.mxu0 0.0
        %500 = vmatprep.subr.mxu0 0.0
        %501 = vmatpush2.msra.mxu0 0.0
        %502 = vmatprep.subr.mxu0 0.0
        %503 = vmatpush2.msra.mxu0 0.0
        %504 = vmatprep.subr.mxu0 0.0
        %505 = vmatpush2.msra.mxu0 0.0
        %506 = vmatprep.subr.mxu0 0.0
        %507 = vmatpush2.msra.mxu0 0.0
        %508 = vmatprep.subr.mxu0 0.0
        %509 = vmatpush2.msra.mxu0 0.0
        %510 = vmatprep.subr.mxu0 0.0
        %511 = vmatpush2.msra.mxu0 0.0
        %512 = vmatprep.mubr.f32.mxu0 0.0
        %513 = vmatmul.mubr.f32.gmra.mxu0 %v446
        %v514 = vpop.f32.mrf.mxu0
        %v515 = vadd.f32 0.0, %v514
        %v516 = vpop.f32.mrf.mxu0
        %517 = vdwg.mxu0
        %v518 = vld [vmem:[#allocation5] sm:$0xff]
        %520 = vset.pattern.permute.xlu0 0
        %521 = vperm.xlu0 %520, %v427
        %v522 = vpop.permute.xlu0 %521
        %v524 = vmul.f32 %v522, %v518
        %v525 = vadd.f32 %v524, %v515
        %526 = vst.msk [vmem:[#allocation5] sm:$0xff] %vm342, %v525
        %527 = vst.msk [vmem:[#allocation3] sm:$0xff] %vm442, %v424
        // Predicated region
        $region49: #{attention_general.1} parent=31 // pred_check
          %p528 = pneg %p252
        $region50: #{attention_general.1} parent=31 // pred_check_branch
          %530 = sbr.rel (%p528) target = $region52
        $region51: #{attention_general.1} parent=31 // pred_region
          %v531 = vld [vmem:[#allocation4] sm:$0xff]
          %v532 = vrcp.pop %v531
          %vm533 = vcmp.gt.f32.partialorder %v531, 0.0
          %v534 = vsel %vm533, %v532, 0.0
          %v535 = vld [vmem:[#allocation5] sm:$0xff]
          %537 = vset.pattern.permute.xlu0 0
          %538 = vperm.xlu0 %537, %v534
          %v539 = vpop.permute.xlu0 %538
          %v541 = vmul.f32 %v535, %v539
          %542 = vst.msk [vmem:[%s251] sm:$0xff] %vm342, %v541
        $region52: #{attention_general.1} parent=31 // pred_fallthru
          _
        %s543 = sand.u32 %s118, 1
        %s544 = scalar_lea.sflag [#allocation8], %s543
        %s545 = sand.u32 %s118, 1
        %s546 = smul.addr %s545, 8
        %s547 = scalar_lea.vmem [#allocation12], %s546
        // Predicated region
        $region53: #{attention_general.1} parent=31 // pred_check
          %p548 = pneg %p128
        $region54: #{attention_general.1} parent=31 // pred_check_branch
          %550 = sbr.rel (%p548) target = $region56
        $region55: #{attention_general.1} parent=31 // pred_region
          %s552 = ssub.s32 128, 128
          %553 = vsyncadd %s544, %s552
          %s554 = smul.addr %s27, 128
          %s555 = scalar_lea.hbm %s3, %s554
          %s557 = sshll.u32 %s547, 4
          %s558 = int_to_ptr.vmem [resolvable:$true] %s557
          %560 = dma.vmem_to_hbm [thread:$0]  %s558, 128, %s555, %s544
        $region56: #{attention_general.1} parent=31 // pred_fallthru
          _
      $region32: #{attention_general.1} parent=5 // pred_fallthru
        _
      %p561 = scmp.le.s32.totalorder 2, %s18
      // Predicated region
      $region57: #{attention_general.1} parent=5 // pred_check
        %p562 = pneg %p561
      $region58: #{attention_general.1} parent=5 // pred_check_branch
        %564 = sbr.rel (%p562) target = $region60
      $region59: #{attention_general.1} parent=5 // pred_region
        %s565 = ssub.s32 %s18, 2
        // Predicated region
        $region61: #{attention_general.1} parent=59 // pred_check
          %p566 = pneg %p134
        $region62: #{attention_general.1} parent=59 // pred_check_branch
          %568 = sbr.rel (%p566) target = $region64
        $region63: #{attention_general.1} parent=59 // pred_region
          %s569 = sand.u32 %s119, 1
          %s570 = scalar_lea.sflag [#allocation8], %s569
          %s571 = sand.u32 %s119, 1
          %s572 = smul.addr %s571, 8
          %s573 = scalar_lea.vmem [#allocation12], %s572
          %574 = dma.done %s570, 128
        $region64: #{attention_general.1} parent=59 // pred_fallthru
          _
      $region60: #{attention_general.1} parent=5 // pred_fallthru
        _
    $region6: #{attention_general.1} parent=1 // loop_footer
      %s22 = sadd.s32 1, %s18
    $region7: #{attention_general.1} parent=1 // loop_footer_branch
      %17 = sbr.rel target = $region3
    $region8: #{attention_general.1} parent=1 // loop_exit
      _
    %575 = vsyncpa [#allocation7], 1
    %s576 = scalar_lea.sflag [#allocation7], 1
    %577 = vsyncpa %s576, 1
    %578 = vsyncpa [#allocation10], 1
    %s579 = scalar_lea.sflag [#allocation10], 1
    %580 = vsyncpa %s579, 1
    %581 = vsyncpa [#allocation8], 1
    %s582 = scalar_lea.sflag [#allocation8], 1
    %583 = vsyncpa %s582, 1

</llo_original>
